<compile_context>
chip_gen: v7x
topology: tpu7x:2x2x1
jax: 0.10.0
libtpu: 0.0.40
codegen_flags: <defaults>
</compile_context>

<pallas_src>
from functools import partial

import jax
import jax.numpy as jnp
from jax.experimental import pallas as pl
from jax.experimental.pallas import tpu as pltpu


# ---------------------------------------------------------------------------
# Kernel
# ---------------------------------------------------------------------------
def _upblock_kernel(x_ref, w_ref, b_ref, o_ref):
    # x_ref: (tm, W*Cin)        compute dtype (bf16)
    # w_ref: (W*Cin, 4*W*Cout)  compute dtype (bf16), block-diagonal fused weight
    # b_ref: (1, 4*W*Cout)      f32
    # o_ref: (tm, 4*W*Cout)     out dtype (lane-dense: 4*W*Cout >= 128 typical)
    acc = jnp.dot(x_ref[...], w_ref[...], preferred_element_type=jnp.float32)
    o_ref[...] = (acc + b_ref[...]).astype(o_ref.dtype)


# ---------------------------------------------------------------------------
# Hardware query + static tiling plan
# ---------------------------------------------------------------------------
def _tpu_limits():
    """(vmem_capacity_bytes, num_tensorcores), with conservative fallbacks."""
    vmem_bytes = 64 * 1024 * 1024          # v7x per-TC VMEM: smallest target
    try:
        info = pltpu.get_tpu_info()
        v = getattr(info, "vmem_capacity_bytes", None)
        if isinstance(v, int) and v > 0:
            vmem_bytes = v
    except Exception:
        pass
    num_tc = 1
    try:
        dev = jax.devices()[0]
        for attr in ("num_cores", "core_count", "num_tensorcores"):
            v = getattr(dev, attr, None)
            if isinstance(v, int) and v > 0:
                num_tc = v
                break
    except Exception:
        pass
    return int(vmem_bytes), max(1, int(num_tc))


def _plan_tiles(M, K, Ncols, in_itemsize, out_itemsize, single_buffer):
    """Row-tile / VMEM-limit selection (all static Python ints)."""
    vmem_bytes, num_tc = _tpu_limits()
    # ~55% of physical VMEM for tiles: big tiles are the main lever on the
    # 128 MiB chips while leaving Mosaic-scratch headroom under v7x's 64 MiB.
    budget = int(vmem_bytes * 0.55)

    wcopies = 1 if single_buffer else 2     # buffers for grid-invariant weight/bias
    fixed = wcopies * (K * Ncols * in_itemsize + Ncols * 4)
    # Per output row: double-buffered x + out tiles plus the f32 epilogue
    # accumulator (acc before the bias-add / downcast).
    per_row = 2 * K * in_itemsize + 2 * Ncols * out_itemsize + Ncols * 4

    avail = max(budget - fixed, 8 * per_row)
    tm = min(2048, avail // per_row)
    tm = max(8, (tm // 8) * 8)

    m8 = pl.cdiv(M, 8) * 8
    if tm > m8:
        tm = m8                             # whole problem fits in one tile
    steps = pl.cdiv(M, tm)
    if num_tc >= 2 and m8 >= 8 * num_tc and steps % num_tc != 0:
        # Keep all TensorCores evenly loaded: round the step count up to a
        # multiple of the TC count (best effort; applied only if it lands).
        target = pl.cdiv(steps, num_tc) * num_tc
        tm_even = max(8, pl.cdiv(pl.cdiv(m8, target), 8) * 8)
        if pl.cdiv(M, tm_even) % num_tc == 0:
            tm = tm_even

    # vmem_limit = actual requirement + slack, floored at the 32 MiB default,
    # capped against the physical ceiling.  In this kernel's regime the
    # requirement is <= budget + slack < 0.9*vmem, so the cap never undercuts it.
    need = fixed + tm * per_row + (4 << 20)
    vmem_limit = int(min(max(need, 32 << 20), int(vmem_bytes * 0.9)))
    return tm, vmem_limit


# ---------------------------------------------------------------------------
# Fused-weight construction (done once per module; cached)
# ---------------------------------------------------------------------------
def _build_fused_params(weight, bias, W, compute_dtype):
    """Block-diagonal fused ConvTranspose2d(k=2,s=2) weight.

    rows  = (j, ci)            K     = W*Cin
    cols  = (di, j', dj, co)   Ncols = 4*W*Cout
    value = weight[ci, co, di, dj] iff j == j'
    """
    Cin, Cout = weight.shape[0], weight.shape[1]
    wt = jnp.transpose(weight, (0, 2, 3, 1))             # (ci, di, dj, co)
    eye = jnp.eye(W, dtype=weight.dtype)                 # (j, j')
    big_w = jnp.einsum("jk,cdeo->jcdkeo", eye, wt)       # (j, ci, di, j', dj, co)
    big_w = big_w.reshape(W * Cin, 4 * W * Cout).astype(compute_dtype)
    bias_row = jnp.tile(bias.astype(jnp.float32), 4 * W).reshape(1, 4 * W * Cout)
    return big_w, bias_row


# ---------------------------------------------------------------------------
# Jitted forward (consumes the pre-built fused weight)
# ---------------------------------------------------------------------------
@partial(jax.jit,
         static_argnames=("data_format", "out_dtype", "compute_dtype",
                          "single_buffer"))
def _upblock_apply(x, big_w, bias_row, *, data_format="NCHW", out_dtype=None,
                   compute_dtype=jnp.bfloat16, single_buffer=True):
    if data_format == "NCHW":
        N, Cin, H, W = x.shape
        # Boundary layout conversion forced by the PyTorch NCHW convention.
        x_nhwc = jnp.transpose(x, (0, 2, 3, 1))
    elif data_format == "NHWC":
        N, H, W, Cin = x.shape
        x_nhwc = x
    else:
        raise ValueError(f"unknown data_format {data_format!r}")

    K, Ncols = big_w.shape
    Cout = Ncols // (4 * W)
    out_dtype = x.dtype if out_dtype is None else out_dtype
    M = N * H

    # rows = (n, i), cols = (j, ci); single fused copy/cast under jit.
    x_m = x_nhwc.reshape(M, K).astype(compute_dtype)

    tm, vmem_limit = _plan_tiles(M, K, Ncols,
                                 jnp.dtype(compute_dtype).itemsize,
                                 jnp.dtype(out_dtype).itemsize,
                                 single_buffer)

    invariant = {"pipeline_mode": pl.Buffered(1)} if single_buffer else {}

    out_m = pl.pallas_call(
        _upblock_kernel,
        out_shape=jax.ShapeDtypeStruct((M, Ncols), out_dtype),
        grid=(pl.cdiv(M, tm),),                 # ragged tail handled by Pallas
        in_specs=[
            pl.BlockSpec((tm, K), lambda i: (i, 0)),             # x row tile
            pl.BlockSpec((K, Ncols), lambda i: (0, 0), **invariant),   # fused W
            pl.BlockSpec((1, Ncols), lambda i: (0, 0), **invariant),   # bias row
        ],
        out_specs=pl.BlockSpec((tm, Ncols), lambda i: (i, 0)),
        compiler_params=pltpu.CompilerParams(
            dimension_semantics=("parallel",),
            vmem_limit_bytes=vmem_limit,
        ),
    )(x_m, big_w, bias_row)

    # Column order (di, j, dj, co) => NHWC is a free row-major reshape.
    y_nhwc = out_m.reshape(N, 2 * H, 2 * W, Cout)
    if data_format == "NHWC":
        return y_nhwc
    # TODO(synk): this NCHW boundary transpose is one full HBM pass over the
    # 4x-upsampled output; keep the surrounding model NHWC (data_format="NHWC")
    # or fold it into the kernel to remove it.
    return jnp.transpose(y_nhwc, (0, 3, 1, 2))


# One-shot fallback if the installed jax rejects pipeline_mode=pl.Buffered(1).
_SINGLE_BUFFER_OK = True


def _apply_with_fallback(x, big_w, bias_row, **kw):
    global _SINGLE_BUFFER_OK
    if _SINGLE_BUFFER_OK:
        try:
            return _upblock_apply(x, big_w, bias_row, single_buffer=True, **kw)
        except Exception:
            _SINGLE_BUFFER_OK = False
    return _upblock_apply(x, big_w, bias_row, single_buffer=False, **kw)


def upblock_forward(x, weight, bias, *, data_format="NCHW",
                    compute_dtype=jnp.bfloat16, out_dtype=None):
    """Functional one-shot form (rebuilds the fused weight every call --
    prefer the UpBlock class, which caches it)."""
    W = x.shape[3] if data_format == "NCHW" else x.shape[2]
    big_w, bias_row = _build_fused_params(weight, bias, W, compute_dtype)
    return _apply_with_fallback(x, big_w, bias_row, data_format=data_format,
                                compute_dtype=compute_dtype, out_dtype=out_dtype)


class UpBlock:
    """Pallas-backed equivalent of the PyTorch UpBlock module (forward only)."""

    def __init__(self, in_channels, out_channels, key,
                 compute_dtype=jnp.bfloat16, out_dtype=None):
        k_w, k_b = jax.random.split(key)
        # PyTorch ConvTranspose2d-style uniform init.
        bound = 1.0 / float(in_channels * 2 * 2) ** 0.5
        self.weight = jax.random.uniform(
            k_w, (in_channels, out_channels, 2, 2),
            minval=-bound, maxval=bound, dtype=jnp.float32)
        self.bias = jax.random.uniform(
            k_b, (out_channels,), minval=-bound, maxval=bound, dtype=jnp.float32)
        self.compute_dtype = compute_dtype
        self.out_dtype = out_dtype
        self._fused_cache = {}              # (W, compute_dtype) -> (big_w, bias_row)

    def _fused(self, W):
        key = (int(W), jnp.dtype(self.compute_dtype).name)
        if key not in self._fused_cache:
            big_w, bias_row = _build_fused_params(
                self.weight, self.bias, W, self.compute_dtype)
            self._fused_cache[key] = (jax.block_until_ready(big_w),
                                      jax.block_until_ready(bias_row))
        return self._fused_cache[key]

    def __call__(self, x, t=None, cond=None, mask=None, *, data_format="NCHW"):
        # t, cond, mask are ignored, exactly as in the PyTorch forward.
        W = x.shape[3] if data_format == "NCHW" else x.shape[2]
        big_w, bias_row = self._fused(W)
        return _apply_with_fallback(x, big_w, bias_row,
                                    data_format=data_format,
                                    compute_dtype=self.compute_dtype,
                                    out_dtype=self.out_dtype)


# ---------------------------------------------------------------------------
# Reference + smoke test
# ---------------------------------------------------------------------------
def _reference_conv_transpose(x_nchw, weight, bias):
    """Pure-JAX f32 reference for ConvTranspose2d(k=2, s=2)."""
    N, Cin, H, W = x_nchw.shape
    Cout = weight.shape[1]
    y = jnp.einsum("ncij,code->noidje", x_nchw, weight)   # (n, co, i, di, j, dj)
    y = y.reshape(N, Cout, 2 * H, 2 * W)
    return y + bias[None, :, None, None]


if __name__ == "__main__":
    key = jax.random.PRNGKey(0)
    k_x, k_p = jax.random.split(key)

    batch, in_ch, out_ch, spatial = 2, 4, 8, 16
    x = jax.random.normal(k_x, (batch, in_ch, spatial, spatial), dtype=jnp.float32)
    t = jnp.zeros((batch,), dtype=jnp.float32)       # unused by forward
    cond = jnp.zeros((batch, 8), dtype=jnp.float32)  # unused by forward
    mask = jnp.ones((batch,), dtype=jnp.float32)     # unused by forward

    block = UpBlock(in_ch, out_ch, k_p)
    y = jax.block_until_ready(block(x, t, cond, mask))
    # Second call exercises the cached fused-weight + compiled fast path.
    y = jax.block_until_ready(block(x, t, cond, mask))

    assert y.shape == (batch, out_ch, 2 * spatial, 2 * spatial), y.shape
    assert y.dtype == x.dtype, y.dtype

    y_ref = _reference_conv_transpose(x, block.weight, block.bias)
    max_err = float(jnp.max(jnp.abs(y.astype(jnp.float32) - y_ref)))
    # bf16 operands / f32 accumulation compared against an f32 reference.
    assert max_err < 5e-2, f"mismatch vs reference: max abs err {max_err}"

    print("KERNEL_OK")
</pallas_src>

<mosaic_0001>
module attributes {stable_mosaic.version = 11 : i64} {
  func.func @_upblock_kernel(%arg0: i32, %arg1: memref<32x64xbf16, #tpu.memory_space<vmem>>, %arg2: memref<64x512xbf16, #tpu.memory_space<vmem>>, %arg3: memref<1x512xf32, #tpu.memory_space<vmem>>, %arg4: memref<32x512xf32, #tpu.memory_space<vmem>>) attributes {dimension_semantics = [#tpu.dimension_semantics<parallel>], iteration_bounds = array<i64: 1>, scalar_prefetch = 0 : i64, scratch_operands = 0 : i64, tpu.core_type = #tpu.core_type<tc>, window_params = [{transform_indices = @transform_0, window_bounds = array<i64: 32, 64>}, {pipeline_mode = #tpu.pipeline_mode<synchronous>, transform_indices = @transform_1, window_bounds = array<i64: 64, 512>}, {pipeline_mode = #tpu.pipeline_mode<synchronous>, transform_indices = @transform_2, window_bounds = array<i64: 1, 512>}, {transform_indices = @transform_3, window_bounds = array<i64: 32, 512>}]} {
    %c0 = arith.constant 0 : index
    %c0_0 = arith.constant 0 : index
    %0 = vector.load %arg1[%c0, %c0_0] : memref<32x64xbf16, #tpu.memory_space<vmem>>, vector<32x64xbf16>
    %c0_1 = arith.constant 0 : index
    %c0_2 = arith.constant 0 : index
    %1 = vector.load %arg2[%c0_1, %c0_2] : memref<64x512xbf16, #tpu.memory_space<vmem>>, vector<64x512xbf16>
    %cst = arith.constant dense<0.000000e+00> : vector<32x512xf32>
    %2 = tpu.matmul %0, %1, %cst {dimension_numbers = #tpu.dot_dimension_numbers<[1], [0], [0], [1], [0, 0, 1, 1], [], []>} : vector<32x64xbf16>, vector<64x512xbf16>, vector<32x512xf32> -> vector<32x512xf32>
    %c0_3 = arith.constant 0 : index
    %c0_4 = arith.constant 0 : index
    %3 = vector.load %arg3[%c0_3, %c0_4] : memref<1x512xf32, #tpu.memory_space<vmem>>, vector<1x512xf32>
    %4 = vector.broadcast %3 : vector<1x512xf32> to vector<32x512xf32>
    %5 = arith.addf %2, %4 : vector<32x512xf32>
    %c0_5 = arith.constant 0 : index
    %c0_6 = arith.constant 0 : index
    %6 = vector.load %arg4[%c0_5, %c0_6] : memref<32x512xf32, #tpu.memory_space<vmem>>, vector<32x512xf32>
    tpu.vector_store %arg4[%c0_5, %c0_6], %5 {strides = array<i32>} : memref<32x512xf32, #tpu.memory_space<vmem>>, vector<32x512xf32>,
    return
  }
  func.func @transform_0(%arg0: i32) -> (i32, i32) {
    %c0_i32 = arith.constant 0 : i32
    %c0_i32_0 = arith.constant 0 : i32
    return %arg0, %c0_i32 : i32, i32
  }
  func.func @transform_1(%arg0: i32) -> (i32, i32) {
    %c0_i32 = arith.constant 0 : i32
    %c0_i32_0 = arith.constant 0 : i32
    %c0_i32_1 = arith.constant 0 : i32
    return %c0_i32, %c0_i32_0 : i32, i32
  }
  func.func @transform_2(%arg0: i32) -> (i32, i32) {
    %c0_i32 = arith.constant 0 : i32
    %c0_i32_0 = arith.constant 0 : i32
    %c0_i32_1 = arith.constant 0 : i32
    return %c0_i32, %c0_i32_0 : i32, i32
  }
  func.func @transform_3(%arg0: i32) -> (i32, i32) {
    %c0_i32 = arith.constant 0 : i32
    %c0_i32_0 = arith.constant 0 : i32
    return %arg0, %c0_i32 : i32, i32
  }
}

module attributes {stable_mosaic.version = 11 : i64} {
  func.func @_upblock_kernel(%arg0: i32, %arg1: memref<32x64xbf16, #tpu.memory_space<vmem>>, %arg2: memref<64x512xbf16, #tpu.memory_space<vmem>>, %arg3: memref<1x512xf32, #tpu.memory_space<vmem>>, %arg4: memref<32x512xf32, #tpu.memory_space<vmem>>) attributes {dimension_semantics = [#tpu.dimension_semantics<parallel>], iteration_bounds = array<i64: 1>, scalar_prefetch = 0 : i64, scratch_operands = 0 : i64, tpu.core_type = #tpu.core_type<tc>, window_params = [{transform_indices = @transform_0, window_bounds = array<i64: 32, 64>}, {pipeline_mode = #tpu.pipeline_mode<synchronous>, transform_indices = @transform_1, window_bounds = array<i64: 64, 512>}, {pipeline_mode = #tpu.pipeline_mode<synchronous>, transform_indices = @transform_2, window_bounds = array<i64: 1, 512>}, {transform_indices = @transform_3, window_bounds = array<i64: 32, 512>}]} {
    %c0 = arith.constant 0 : index
    %c0_0 = arith.constant 0 : index
    %0 = vector.load %arg1[%c0, %c0_0] : memref<32x64xbf16, #tpu.memory_space<vmem>>, vector<32x64xbf16>
    %c0_1 = arith.constant 0 : index
    %c0_2 = arith.constant 0 : index
    %1 = vector.load %arg2[%c0_1, %c0_2] : memref<64x512xbf16, #tpu.memory_space<vmem>>, vector<64x512xbf16>
    %cst = arith.constant dense<0.000000e+00> : vector<32x512xf32>
    %2 = tpu.matmul %0, %1, %cst {dimension_numbers = #tpu.dot_dimension_numbers<[1], [0], [0], [1], [0, 0, 1, 1], [], []>} : vector<32x64xbf16>, vector<64x512xbf16>, vector<32x512xf32> -> vector<32x512xf32>
    %c0_3 = arith.constant 0 : index
    %c0_4 = arith.constant 0 : index
    %3 = vector.load %arg3[%c0_3, %c0_4] : memref<1x512xf32, #tpu.memory_space<vmem>>, vector<1x512xf32>
    %4 = vector.broadcast %3 : vector<1x512xf32> to vector<32x512xf32>
    %5 = arith.addf %2, %4 : vector<32x512xf32>
    %c0_5 = arith.constant 0 : index
    %c0_6 = arith.constant 0 : index
    %6 = vector.load %arg4[%c0_5, %c0_6] : memref<32x512xf32, #tpu.memory_space<vmem>>, vector<32x512xf32>
    tpu.vector_store %arg4[%c0_5, %c0_6], %5 {strides = array<i32>} : memref<32x512xf32, #tpu.memory_space<vmem>>, vector<32x512xf32>,
    return
  }
  func.func @transform_0(%arg0: i32) -> (i32, i32) {
    %c0_i32 = arith.constant 0 : i32
    %c0_i32_0 = arith.constant 0 : i32
    return %arg0, %c0_i32 : i32, i32
  }
  func.func @transform_1(%arg0: i32) -> (i32, i32) {
    %c0_i32 = arith.constant 0 : i32
    %c0_i32_0 = arith.constant 0 : i32
    %c0_i32_1 = arith.constant 0 : i32
    return %c0_i32, %c0_i32_0 : i32, i32
  }
  func.func @transform_2(%arg0: i32) -> (i32, i32) {
    %c0_i32 = arith.constant 0 : i32
    %c0_i32_0 = arith.constant 0 : i32
    %c0_i32_1 = arith.constant 0 : i32
    return %c0_i32, %c0_i32_0 : i32, i32
  }
  func.func @transform_3(%arg0: i32) -> (i32, i32) {
    %c0_i32 = arith.constant 0 : i32
    %c0_i32_0 = arith.constant 0 : i32
    return %arg0, %c0_i32 : i32, i32
  }
}

</mosaic_0001>

<llo_original>
// kernel: _upblock_apply.1
$region0: #{_upblock_apply.1}
  #allocation0 [shape = 'u32[]', space=smem, size = 0x4, offset = 0x4, fixed_abs, tag = 'smem constant byte address 0x4 - core index']
  #allocation1 [shape = 'u32[144,128]{1,0:T(1,128)}', space=vmem, size = 0x12000, scoped, tag = 'internal scratch']
  %s0 = inlined_call_operand.vmem [shape: bf16[32,64], index: 0, kind: input, shape index: {}]
  %s1 = inlined_call_operand.vmem [shape: bf16[64,512], index: 1, kind: input, shape index: {}]
  %s2 = inlined_call_operand.vmem [shape: f32[1,512], index: 2, kind: input, shape index: {}]
  %s3 = inlined_call_operand.vmem [shape: f32[32,512], index: 3, kind: output, shape index: {}]
  %s4 = sld [smem:[#allocation0]]
  $region22: #{_upblock_apply.1} parent=0
    _
  %s6 = ssub.s32 1, %s4
  %s7 = scalar_select 0, %s6, %s4
  // Predicated region
  $region2: #{_upblock_apply.1} parent=0 // pred_check
    _
  $region3: #{_upblock_apply.1} parent=0 // pred_check_branch
    %9 = sbr.rel (0) target = $region5
  $region4: #{_upblock_apply.1} parent=0 // pred_region
    _
  $region5: #{_upblock_apply.1} parent=0 // pred_fallthru
    _
  // Predicated region
  $region6: #{_upblock_apply.1} parent=0 // pred_check
    _
  $region7: #{_upblock_apply.1} parent=0 // pred_check_branch
    %11 = sbr.rel (0) target = $region9
  $region8: #{_upblock_apply.1} parent=0 // pred_region
    _
  $region9: #{_upblock_apply.1} parent=0 // pred_fallthru
    _
  // Predicated region
  $region10: #{_upblock_apply.1} parent=0 // pred_check
    _
  $region11: #{_upblock_apply.1} parent=0 // pred_check_branch
    %13 = sbr.rel (0) target = $region13
  $region12: #{_upblock_apply.1} parent=0 // pred_region
    _
  $region13: #{_upblock_apply.1} parent=0 // pred_fallthru
    _
  %v15 = vld [vmem:[%s0] sm:$0xf]
  %v16 = vld [vmem:[%s0 + $0x4] sm:$0xf]
  %v17 = vld [vmem:[%s0 + $0x8] sm:$0xf]
  %v18 = vld [vmem:[%s0 + $0xc] sm:$0xf]
  %v19 = vld [vmem:[%s1] sm:$0xff]
  %v20 = vld [vmem:[%s1 + $0x8] sm:$0xff]
  %v21 = vld [vmem:[%s1 + $0x10] sm:$0xff]
  %v22 = vld [vmem:[%s1 + $0x18] sm:$0xff]
  %v23 = vld [vmem:[%s1 + $0x20] sm:$0xff]
  %v24 = vld [vmem:[%s1 + $0x28] sm:$0xff]
  %v25 = vld [vmem:[%s1 + $0x30] sm:$0xff]
  %v26 = vld [vmem:[%s1 + $0x38] sm:$0xff]
  %v27 = vld [vmem:[%s1 + $0x40] sm:$0xff]
  %v28 = vld [vmem:[%s1 + $0x48] sm:$0xff]
  %v29 = vld [vmem:[%s1 + $0x50] sm:$0xff]
  %v30 = vld [vmem:[%s1 + $0x58] sm:$0xff]
  %v31 = vld [vmem:[%s1 + $0x60] sm:$0xff]
  %v32 = vld [vmem:[%s1 + $0x68] sm:$0xff]
  %v33 = vld [vmem:[%s1 + $0x70] sm:$0xff]
  %v34 = vld [vmem:[%s1 + $0x78] sm:$0xff]
  %v35 = vld [vmem:[%s2] sm:$0xf]
  %v37 = vlaneseq
  %v38 = vshrl.u32 %v37, 7
  %v39 = vsub.s32 0, %v38
  %v40 = vrot.slane %v35, %v39
  %v41 = vlaneseq
  %v42 = vshrl.u32 %v41, 7
  %v43 = vsub.s32 1, %v42
  %v44 = vrot.slane %v35, %v43
  %v45 = vlaneseq
  %v46 = vshrl.u32 %v45, 7
  %v47 = vsub.s32 2, %v46
  %v48 = vrot.slane %v35, %v47
  %v49 = vlaneseq
  %v50 = vshrl.u32 %v49, 7
  %v51 = vsub.s32 3, %v50
  %v52 = vrot.slane %v35, %v51
  %v61 = vunpack.c.l.b16 %v15
  %v62 = vunpack.c.l.b16 %v16
  %v63 = vunpack.c.l.b16 %v17
  %v64 = vunpack.c.l.b16 %v18
  %v65 = vpack.c.b16 %v62, %v61
  %v66 = vpack.c.b16 %v64, %v63
  %v83 = vunpack.c.l.b16 %v19
  %v84 = vunpack.c.h.b16 %v19
  %v85 = vunpack.c.l.b16 %v20
  %v86 = vunpack.c.h.b16 %v20
  %v87 = vunpack.c.l.b16 %v21
  %v88 = vunpack.c.h.b16 %v21
  %v89 = vunpack.c.l.b16 %v22
  %v90 = vunpack.c.h.b16 %v22
  %v91 = vunpack.c.l.b16 %v23
  %v92 = vunpack.c.h.b16 %v23
  %v93 = vunpack.c.l.b16 %v24
  %v94 = vunpack.c.h.b16 %v24
  %v95 = vunpack.c.l.b16 %v25
  %v96 = vunpack.c.h.b16 %v25
  %v97 = vunpack.c.l.b16 %v26
  %v98 = vunpack.c.h.b16 %v26
  %v99 = vunpack.c.l.b16 %v27
  %v100 = vunpack.c.h.b16 %v27
  %v101 = vunpack.c.l.b16 %v28
  %v102 = vunpack.c.h.b16 %v28
  %v103 = vunpack.c.l.b16 %v29
  %v104 = vunpack.c.h.b16 %v29
  %v105 = vunpack.c.l.b16 %v30
  %v106 = vunpack.c.h.b16 %v30
  %v107 = vunpack.c.l.b16 %v31
  %v108 = vunpack.c.h.b16 %v31
  %v109 = vunpack.c.l.b16 %v32
  %v110 = vunpack.c.h.b16 %v32
  %v111 = vunpack.c.l.b16 %v33
  %v112 = vunpack.c.h.b16 %v33
  %v113 = vunpack.c.l.b16 %v34
  %v114 = vunpack.c.h.b16 %v34
  %v115 = vpack.c.b16 %v87, %v83
  %v116 = vpack.c.b16 %v88, %v84
  %v117 = vpack.c.b16 %v89, %v85
  %v118 = vpack.c.b16 %v90, %v86
  %v119 = vpack.c.b16 %v95, %v91
  %v120 = vpack.c.b16 %v96, %v92
  %v121 = vpack.c.b16 %v97, %v93
  %v122 = vpack.c.b16 %v98, %v94
  %v123 = vpack.c.b16 %v103, %v99
  %v124 = vpack.c.b16 %v104, %v100
  %v125 = vpack.c.b16 %v105, %v101
  %v126 = vpack.c.b16 %v106, %v102
  %v127 = vpack.c.b16 %v111, %v107
  %v128 = vpack.c.b16 %v112, %v108
  %v129 = vpack.c.b16 %v113, %v109
  %v130 = vpack.c.b16 %v114, %v110
  %vm147 = vcmask 523264
  %v149 = vsel %vm147, %v65, 0
  %v152 = vsel %vm147, %v66, 0
  %154 = vmatprep.subr.bf16.mxu0 %v116
  %155 = vmatpush1.bf16.msra.mxu0 %v115
  %156 = vmatprep.subr.bf16.mxu0 %v120
  %157 = vmatpush1.bf16.msra.mxu0 %v119
  %158 = vmatprep.subr.bf16.mxu0 %v124
  %159 = vmatpush1.bf16.msra.mxu0 %v123
  %160 = vmatprep.subr.bf16.mxu0 %v128
  %161 = vmatpush1.bf16.msra.mxu0 %v127
  %162 = vmatprep.subr.bf16.mxu0 0
  %163 = vmatpush1.bf16.msra.mxu0 0
  %164 = vmatprep.subr.bf16.mxu0 0
  %165 = vmatpush1.bf16.msra.mxu0 0
  %166 = vmatprep.subr.bf16.mxu0 0
  %167 = vmatpush1.bf16.msra.mxu0 0
  %168 = vmatprep.subr.bf16.mxu0 0
  %169 = vmatpush1.bf16.msra.mxu0 0
  %170 = vmatprep.subr.bf16.mxu0 0
  %171 = vmatpush1.bf16.msra.mxu0 0
  %172 = vmatprep.subr.bf16.mxu0 0
  %173 = vmatpush1.bf16.msra.mxu0 0
  %174 = vmatprep.subr.bf16.mxu0 0
  %175 = vmatpush1.bf16.msra.mxu0 0
  %176 = vmatprep.subr.bf16.mxu0 0
  %177 = vmatpush1.bf16.msra.mxu0 0
  %178 = vmatprep.subr.bf16.mxu0 0
  %179 = vmatpush1.bf16.msra.mxu0 0
  %180 = vmatprep.subr.bf16.mxu0 0
  %181 = vmatpush1.bf16.msra.mxu0 0
  %182 = vmatprep.subr.bf16.mxu0 0
  %183 = vmatpush1.bf16.msra.mxu0 0
  %184 = vmatprep.subr.bf16.mxu0 0
  %185 = vmatpush1.bf16.msra.mxu0 0
  %186 = vmatprep.mubr.bf16.mxu0 0
  %187 = vmatmul.mubr.bf16.gmra.mrb[0].mxu0 %v149
  %v188 = vpop.f32.mrb[0].mxu0
  %v189 = vadd.f32 %v40, %v188
  %v190 = vpop.f32.mrb[0].mxu0
  %v191 = vadd.f32 %v44, %v190
  %v192 = vpop.f32.mrb[0].mxu0
  %v193 = vadd.f32 %v40, %v192
  %v194 = vpop.f32.mrb[0].mxu0
  %v195 = vadd.f32 %v44, %v194
  %196 = vmatprep.mubr.bf16.mxu0 0
  %197 = vmatmul.mubr.bf16.gmra.mrb[0].mxu0 %v152
  %v198 = vpop.f32.mrb[0].mxu0
  %v199 = vadd.f32 %v40, %v198
  %v200 = vpop.f32.mrb[0].mxu0
  %v201 = vadd.f32 %v44, %v200
  %v202 = vpop.f32.mrb[0].mxu0
  %v203 = vadd.f32 %v40, %v202
  %v204 = vpop.f32.mrb[0].mxu0
  %v205 = vadd.f32 %v44, %v204
  %206 = vdwg.mxu0
  %207 = vmatprep.subr.bf16.mxu0 %v118
  %208 = vmatpush1.bf16.msra.mxu0 %v117
  %209 = vmatprep.subr.bf16.mxu0 %v122
  %210 = vmatpush1.bf16.msra.mxu0 %v121
  %211 = vmatprep.subr.bf16.mxu0 %v126
  %212 = vmatpush1.bf16.msra.mxu0 %v125
  %213 = vmatprep.subr.bf16.mxu0 %v130
  %214 = vmatpush1.bf16.msra.mxu0 %v129
  %215 = vmatprep.subr.bf16.mxu0 0
  %216 = vmatpush1.bf16.msra.mxu0 0
  %217 = vmatprep.subr.bf16.mxu0 0
  %218 = vmatpush1.bf16.msra.mxu0 0
  %219 = vmatprep.subr.bf16.mxu0 0
  %220 = vmatpush1.bf16.msra.mxu0 0
  %221 = vmatprep.subr.bf16.mxu0 0
  %222 = vmatpush1.bf16.msra.mxu0 0
  %223 = vmatprep.subr.bf16.mxu0 0
  %224 = vmatpush1.bf16.msra.mxu0 0
  %225 = vmatprep.subr.bf16.mxu0 0
  %226 = vmatpush1.bf16.msra.mxu0 0
  %227 = vmatprep.subr.bf16.mxu0 0
  %228 = vmatpush1.bf16.msra.mxu0 0
  %229 = vmatprep.subr.bf16.mxu0 0
  %230 = vmatpush1.bf16.msra.mxu0 0
  %231 = vmatprep.subr.bf16.mxu0 0
  %232 = vmatpush1.bf16.msra.mxu0 0
  %233 = vmatprep.subr.bf16.mxu0 0
  %234 = vmatpush1.bf16.msra.mxu0 0
  %235 = vmatprep.subr.bf16.mxu0 0
  %236 = vmatpush1.bf16.msra.mxu0 0
  %237 = vmatprep.subr.bf16.mxu0 0
  %238 = vmatpush1.bf16.msra.mxu0 0
  %239 = vmatprep.mubr.bf16.mxu0 0
  %240 = vmatmul.mubr.bf16.gmra.mrb[0].mxu0 %v149
  %v241 = vpop.f32.mrb[0].mxu0
  %v242 = vadd.f32 %v48, %v241
  %v243 = vpop.f32.mrb[0].mxu0
  %v244 = vadd.f32 %v52, %v243
  %v245 = vpop.f32.mrb[0].mxu0
  %v246 = vadd.f32 %v48, %v245
  %v247 = vpop.f32.mrb[0].mxu0
  %v248 = vadd.f32 %v52, %v247
  %249 = vmatprep.mubr.bf16.mxu0 0
  %250 = vmatmul.mubr.bf16.gmra.mrb[0].mxu0 %v152
  %v251 = vpop.f32.mrb[0].mxu0
  %v252 = vadd.f32 %v48, %v251
  %v253 = vpop.f32.mrb[0].mxu0
  %v254 = vadd.f32 %v52, %v253
  %v255 = vpop.f32.mrb[0].mxu0
  %v256 = vadd.f32 %v48, %v255
  %v257 = vpop.f32.mrb[0].mxu0
  %v258 = vadd.f32 %v52, %v257
  %259 = vdwg.mxu0
  %260 = vst [vmem:[%s3] sm:$0xff] %v189
  %261 = vst [vmem:[%s3 + $0x8] sm:$0xff] %v191
  %262 = vst [vmem:[%s3 + $0x10] sm:$0xff] %v242
  %263 = vst [vmem:[%s3 + $0x18] sm:$0xff] %v244
  %264 = vst [vmem:[%s3 + $0x20] sm:$0xff] %v193
  %265 = vst [vmem:[%s3 + $0x28] sm:$0xff] %v195
  %266 = vst [vmem:[%s3 + $0x30] sm:$0xff] %v246
  %267 = vst [vmem:[%s3 + $0x38] sm:$0xff] %v248
  %268 = vst [vmem:[%s3 + $0x40] sm:$0xff] %v199
  %269 = vst [vmem:[%s3 + $0x48] sm:$0xff] %v201
  %270 = vst [vmem:[%s3 + $0x50] sm:$0xff] %v252
  %271 = vst [vmem:[%s3 + $0x58] sm:$0xff] %v254
  %272 = vst [vmem:[%s3 + $0x60] sm:$0xff] %v203
  %273 = vst [vmem:[%s3 + $0x68] sm:$0xff] %v205
  %274 = vst [vmem:[%s3 + $0x70] sm:$0xff] %v256
  %275 = vst [vmem:[%s3 + $0x78] sm:$0xff] %v258
  // Predicated region
  $region14: #{_upblock_apply.1} parent=0 // pred_check
    _
  $region15: #{_upblock_apply.1} parent=0 // pred_check_branch
    %277 = sbr.rel (0) target = $region17
  $region16: #{_upblock_apply.1} parent=0 // pred_region
    _
  $region17: #{_upblock_apply.1} parent=0 // pred_fallthru
    _
  // Predicated region
  $region18: #{_upblock_apply.1} parent=0 // pred_check
    _
  $region19: #{_upblock_apply.1} parent=0 // pred_check_branch
    %279 = sbr.rel (0) target = $region21
  $region20: #{_upblock_apply.1} parent=0 // pred_region
    _
  $region21: #{_upblock_apply.1} parent=0 // pred_fallthru
    _

// kernel: _upblock_apply.1
$region0: #{_upblock_apply.1}
  #allocation0 [shape = 'u32[]', space=smem, size = 0x4, offset = 0x4, fixed_abs, tag = 'smem constant byte address 0x4 - core index']
  #allocation1 [shape = 'u32[144,128]{1,0:T(1,128)}', space=vmem, size = 0x12000, scoped, tag = 'internal scratch']
  %s0 = inlined_call_operand.vmem [shape: bf16[32,64], index: 0, kind: input, shape index: {}]
  %s1 = inlined_call_operand.vmem [shape: bf16[64,512], index: 1, kind: input, shape index: {}]
  %s2 = inlined_call_operand.vmem [shape: f32[1,512], index: 2, kind: input, shape index: {}]
  %s3 = inlined_call_operand.vmem [shape: f32[32,512], index: 3, kind: output, shape index: {}]
  %s4 = sld [smem:[#allocation0]]
  $region22: #{_upblock_apply.1} parent=0
    _
  %s6 = ssub.s32 1, %s4
  %s7 = scalar_select 0, %s6, %s4
  // Predicated region
  $region2: #{_upblock_apply.1} parent=0 // pred_check
    _
  $region3: #{_upblock_apply.1} parent=0 // pred_check_branch
    %9 = sbr.rel (0) target = $region5
  $region4: #{_upblock_apply.1} parent=0 // pred_region
    _
  $region5: #{_upblock_apply.1} parent=0 // pred_fallthru
    _
  // Predicated region
  $region6: #{_upblock_apply.1} parent=0 // pred_check
    _
  $region7: #{_upblock_apply.1} parent=0 // pred_check_branch
    %11 = sbr.rel (0) target = $region9
  $region8: #{_upblock_apply.1} parent=0 // pred_region
    _
  $region9: #{_upblock_apply.1} parent=0 // pred_fallthru
    _
  // Predicated region
  $region10: #{_upblock_apply.1} parent=0 // pred_check
    _
  $region11: #{_upblock_apply.1} parent=0 // pred_check_branch
    %13 = sbr.rel (0) target = $region13
  $region12: #{_upblock_apply.1} parent=0 // pred_region
    _
  $region13: #{_upblock_apply.1} parent=0 // pred_fallthru
    _
  %v15 = vld [vmem:[%s0] sm:$0xf]
  %v16 = vld [vmem:[%s0 + $0x4] sm:$0xf]
  %v17 = vld [vmem:[%s0 + $0x8] sm:$0xf]
  %v18 = vld [vmem:[%s0 + $0xc] sm:$0xf]
  %v19 = vld [vmem:[%s1] sm:$0xff]
  %v20 = vld [vmem:[%s1 + $0x8] sm:$0xff]
  %v21 = vld [vmem:[%s1 + $0x10] sm:$0xff]
  %v22 = vld [vmem:[%s1 + $0x18] sm:$0xff]
  %v23 = vld [vmem:[%s1 + $0x20] sm:$0xff]
  %v24 = vld [vmem:[%s1 + $0x28] sm:$0xff]
  %v25 = vld [vmem:[%s1 + $0x30] sm:$0xff]
  %v26 = vld [vmem:[%s1 + $0x38] sm:$0xff]
  %v27 = vld [vmem:[%s1 + $0x40] sm:$0xff]
  %v28 = vld [vmem:[%s1 + $0x48] sm:$0xff]
  %v29 = vld [vmem:[%s1 + $0x50] sm:$0xff]
  %v30 = vld [vmem:[%s1 + $0x58] sm:$0xff]
  %v31 = vld [vmem:[%s1 + $0x60] sm:$0xff]
  %v32 = vld [vmem:[%s1 + $0x68] sm:$0xff]
  %v33 = vld [vmem:[%s1 + $0x70] sm:$0xff]
  %v34 = vld [vmem:[%s1 + $0x78] sm:$0xff]
  %v35 = vld [vmem:[%s2] sm:$0xf]
  %v37 = vlaneseq
  %v38 = vshrl.u32 %v37, 7
  %v39 = vsub.s32 0, %v38
  %v40 = vrot.slane %v35, %v39
  %v41 = vlaneseq
  %v42 = vshrl.u32 %v41, 7
  %v43 = vsub.s32 1, %v42
  %v44 = vrot.slane %v35, %v43
  %v45 = vlaneseq
  %v46 = vshrl.u32 %v45, 7
  %v47 = vsub.s32 2, %v46
  %v48 = vrot.slane %v35, %v47
  %v49 = vlaneseq
  %v50 = vshrl.u32 %v49, 7
  %v51 = vsub.s32 3, %v50
  %v52 = vrot.slane %v35, %v51
  %v61 = vunpack.c.l.b16 %v15
  %v62 = vunpack.c.l.b16 %v16
  %v63 = vunpack.c.l.b16 %v17
  %v64 = vunpack.c.l.b16 %v18
  %v65 = vpack.c.b16 %v62, %v61
  %v66 = vpack.c.b16 %v64, %v63
  %v83 = vunpack.c.l.b16 %v19
  %v84 = vunpack.c.h.b16 %v19
  %v85 = vunpack.c.l.b16 %v20
  %v86 = vunpack.c.h.b16 %v20
  %v87 = vunpack.c.l.b16 %v21
  %v88 = vunpack.c.h.b16 %v21
  %v89 = vunpack.c.l.b16 %v22
  %v90 = vunpack.c.h.b16 %v22
  %v91 = vunpack.c.l.b16 %v23
  %v92 = vunpack.c.h.b16 %v23
  %v93 = vunpack.c.l.b16 %v24
  %v94 = vunpack.c.h.b16 %v24
  %v95 = vunpack.c.l.b16 %v25
  %v96 = vunpack.c.h.b16 %v25
  %v97 = vunpack.c.l.b16 %v26
  %v98 = vunpack.c.h.b16 %v26
  %v99 = vunpack.c.l.b16 %v27
  %v100 = vunpack.c.h.b16 %v27
  %v101 = vunpack.c.l.b16 %v28
  %v102 = vunpack.c.h.b16 %v28
  %v103 = vunpack.c.l.b16 %v29
  %v104 = vunpack.c.h.b16 %v29
  %v105 = vunpack.c.l.b16 %v30
  %v106 = vunpack.c.h.b16 %v30
  %v107 = vunpack.c.l.b16 %v31
  %v108 = vunpack.c.h.b16 %v31
  %v109 = vunpack.c.l.b16 %v32
  %v110 = vunpack.c.h.b16 %v32
  %v111 = vunpack.c.l.b16 %v33
  %v112 = vunpack.c.h.b16 %v33
  %v113 = vunpack.c.l.b16 %v34
  %v114 = vunpack.c.h.b16 %v34
  %v115 = vpack.c.b16 %v87, %v83
  %v116 = vpack.c.b16 %v88, %v84
  %v117 = vpack.c.b16 %v89, %v85
  %v118 = vpack.c.b16 %v90, %v86
  %v119 = vpack.c.b16 %v95, %v91
  %v120 = vpack.c.b16 %v96, %v92
  %v121 = vpack.c.b16 %v97, %v93
  %v122 = vpack.c.b16 %v98, %v94
  %v123 = vpack.c.b16 %v103, %v99
  %v124 = vpack.c.b16 %v104, %v100
  %v125 = vpack.c.b16 %v105, %v101
  %v126 = vpack.c.b16 %v106, %v102
  %v127 = vpack.c.b16 %v111, %v107
  %v128 = vpack.c.b16 %v112, %v108
  %v129 = vpack.c.b16 %v113, %v109
  %v130 = vpack.c.b16 %v114, %v110
  %vm147 = vcmask 523264
  %v149 = vsel %vm147, %v65, 0
  %v152 = vsel %vm147, %v66, 0
  %154 = vmatprep.subr.bf16.mxu0 %v116
  %155 = vmatpush1.bf16.msra.mxu0 %v115
  %156 = vmatprep.subr.bf16.mxu0 %v120
  %157 = vmatpush1.bf16.msra.mxu0 %v119
  %158 = vmatprep.subr.bf16.mxu0 %v124
  %159 = vmatpush1.bf16.msra.mxu0 %v123
  %160 = vmatprep.subr.bf16.mxu0 %v128
  %161 = vmatpush1.bf16.msra.mxu0 %v127
  %162 = vmatprep.subr.bf16.mxu0 0
  %163 = vmatpush1.bf16.msra.mxu0 0
  %164 = vmatprep.subr.bf16.mxu0 0
  %165 = vmatpush1.bf16.msra.mxu0 0
  %166 = vmatprep.subr.bf16.mxu0 0
  %167 = vmatpush1.bf16.msra.mxu0 0
  %168 = vmatprep.subr.bf16.mxu0 0
  %169 = vmatpush1.bf16.msra.mxu0 0
  %170 = vmatprep.subr.bf16.mxu0 0
  %171 = vmatpush1.bf16.msra.mxu0 0
  %172 = vmatprep.subr.bf16.mxu0 0
  %173 = vmatpush1.bf16.msra.mxu0 0
  %174 = vmatprep.subr.bf16.mxu0 0
  %175 = vmatpush1.bf16.msra.mxu0 0
  %176 = vmatprep.subr.bf16.mxu0 0
  %177 = vmatpush1.bf16.msra.mxu0 0
  %178 = vmatprep.subr.bf16.mxu0 0
  %179 = vmatpush1.bf16.msra.mxu0 0
  %180 = vmatprep.subr.bf16.mxu0 0
  %181 = vmatpush1.bf16.msra.mxu0 0
  %182 = vmatprep.subr.bf16.mxu0 0
  %183 = vmatpush1.bf16.msra.mxu0 0
  %184 = vmatprep.subr.bf16.mxu0 0
  %185 = vmatpush1.bf16.msra.mxu0 0
  %186 = vmatprep.mubr.bf16.mxu0 0
  %187 = vmatmul.mubr.bf16.gmra.mrb[0].mxu0 %v149
  %v188 = vpop.f32.mrb[0].mxu0
  %v189 = vadd.f32 %v40, %v188
  %v190 = vpop.f32.mrb[0].mxu0
  %v191 = vadd.f32 %v44, %v190
  %v192 = vpop.f32.mrb[0].mxu0
  %v193 = vadd.f32 %v40, %v192
  %v194 = vpop.f32.mrb[0].mxu0
  %v195 = vadd.f32 %v44, %v194
  %196 = vmatprep.mubr.bf16.mxu0 0
  %197 = vmatmul.mubr.bf16.gmra.mrb[0].mxu0 %v152
  %v198 = vpop.f32.mrb[0].mxu0
  %v199 = vadd.f32 %v40, %v198
  %v200 = vpop.f32.mrb[0].mxu0
  %v201 = vadd.f32 %v44, %v200
  %v202 = vpop.f32.mrb[0].mxu0
  %v203 = vadd.f32 %v40, %v202
  %v204 = vpop.f32.mrb[0].mxu0
  %v205 = vadd.f32 %v44, %v204
  %206 = vdwg.mxu0
  %207 = vmatprep.subr.bf16.mxu0 %v118
  %208 = vmatpush1.bf16.msra.mxu0 %v117
  %209 = vmatprep.subr.bf16.mxu0 %v122
  %210 = vmatpush1.bf16.msra.mxu0 %v121
  %211 = vmatprep.subr.bf16.mxu0 %v126
  %212 = vmatpush1.bf16.msra.mxu0 %v125
  %213 = vmatprep.subr.bf16.mxu0 %v130
  %214 = vmatpush1.bf16.msra.mxu0 %v129
  %215 = vmatprep.subr.bf16.mxu0 0
  %216 = vmatpush1.bf16.msra.mxu0 0
  %217 = vmatprep.subr.bf16.mxu0 0
  %218 = vmatpush1.bf16.msra.mxu0 0
  %219 = vmatprep.subr.bf16.mxu0 0
  %220 = vmatpush1.bf16.msra.mxu0 0
  %221 = vmatprep.subr.bf16.mxu0 0
  %222 = vmatpush1.bf16.msra.mxu0 0
  %223 = vmatprep.subr.bf16.mxu0 0
  %224 = vmatpush1.bf16.msra.mxu0 0
  %225 = vmatprep.subr.bf16.mxu0 0
  %226 = vmatpush1.bf16.msra.mxu0 0
  %227 = vmatprep.subr.bf16.mxu0 0
  %228 = vmatpush1.bf16.msra.mxu0 0
  %229 = vmatprep.subr.bf16.mxu0 0
  %230 = vmatpush1.bf16.msra.mxu0 0
  %231 = vmatprep.subr.bf16.mxu0 0
  %232 = vmatpush1.bf16.msra.mxu0 0
  %233 = vmatprep.subr.bf16.mxu0 0
  %234 = vmatpush1.bf16.msra.mxu0 0
  %235 = vmatprep.subr.bf16.mxu0 0
  %236 = vmatpush1.bf16.msra.mxu0 0
  %237 = vmatprep.subr.bf16.mxu0 0
  %238 = vmatpush1.bf16.msra.mxu0 0
  %239 = vmatprep.mubr.bf16.mxu0 0
  %240 = vmatmul.mubr.bf16.gmra.mrb[0].mxu0 %v149
  %v241 = vpop.f32.mrb[0].mxu0
  %v242 = vadd.f32 %v48, %v241
  %v243 = vpop.f32.mrb[0].mxu0
  %v244 = vadd.f32 %v52, %v243
  %v245 = vpop.f32.mrb[0].mxu0
  %v246 = vadd.f32 %v48, %v245
  %v247 = vpop.f32.mrb[0].mxu0
  %v248 = vadd.f32 %v52, %v247
  %249 = vmatprep.mubr.bf16.mxu0 0
  %250 = vmatmul.mubr.bf16.gmra.mrb[0].mxu0 %v152
  %v251 = vpop.f32.mrb[0].mxu0
  %v252 = vadd.f32 %v48, %v251
  %v253 = vpop.f32.mrb[0].mxu0
  %v254 = vadd.f32 %v52, %v253
  %v255 = vpop.f32.mrb[0].mxu0
  %v256 = vadd.f32 %v48, %v255
  %v257 = vpop.f32.mrb[0].mxu0
  %v258 = vadd.f32 %v52, %v257
  %259 = vdwg.mxu0
  %260 = vst [vmem:[%s3] sm:$0xff] %v189
  %261 = vst [vmem:[%s3 + $0x8] sm:$0xff] %v191
  %262 = vst [vmem:[%s3 + $0x10] sm:$0xff] %v242
  %263 = vst [vmem:[%s3 + $0x18] sm:$0xff] %v244
  %264 = vst [vmem:[%s3 + $0x20] sm:$0xff] %v193
  %265 = vst [vmem:[%s3 + $0x28] sm:$0xff] %v195
  %266 = vst [vmem:[%s3 + $0x30] sm:$0xff] %v246
  %267 = vst [vmem:[%s3 + $0x38] sm:$0xff] %v248
  %268 = vst [vmem:[%s3 + $0x40] sm:$0xff] %v199
  %269 = vst [vmem:[%s3 + $0x48] sm:$0xff] %v201
  %270 = vst [vmem:[%s3 + $0x50] sm:$0xff] %v252
  %271 = vst [vmem:[%s3 + $0x58] sm:$0xff] %v254
  %272 = vst [vmem:[%s3 + $0x60] sm:$0xff] %v203
  %273 = vst [vmem:[%s3 + $0x68] sm:$0xff] %v205
  %274 = vst [vmem:[%s3 + $0x70] sm:$0xff] %v256
  %275 = vst [vmem:[%s3 + $0x78] sm:$0xff] %v258
  // Predicated region
  $region14: #{_upblock_apply.1} parent=0 // pred_check
    _
  $region15: #{_upblock_apply.1} parent=0 // pred_check_branch
    %277 = sbr.rel (0) target = $region17
  $region16: #{_upblock_apply.1} parent=0 // pred_region
    _
  $region17: #{_upblock_apply.1} parent=0 // pred_fallthru
    _
  // Predicated region
  $region18: #{_upblock_apply.1} parent=0 // pred_check
    _
  $region19: #{_upblock_apply.1} parent=0 // pred_check_branch
    %279 = sbr.rel (0) target = $region21
  $region20: #{_upblock_apply.1} parent=0 // pred_region
    _
  $region21: #{_upblock_apply.1} parent=0 // pred_fallthru
    _

</llo_original>
